<compile_context>
chip_gen: v7x
topology: tpu7x:2x2x1
jax: 0.10.0
libtpu: 0.0.40
codegen_flags: <defaults>
</compile_context>

<pallas_src>
import jax
import jax.numpy as jnp
from jax import lax
from jax.experimental import pallas as pl
from jax.experimental.pallas import tpu as pltpu


def _round_up(x, m):
    return ((x + m - 1) // m) * m


# ----------------------------------------------------------------------------
# Parameter construction (plain-JAX glue): reproduces OrthoConv2d.weights()
# for stride=1, dilation=1, groups=1, init='permutation'.
# The geotorch 'expm' trivialization is replaced by a deterministic direct
# construction of (semi-)orthogonal matrices of the same shapes.
# ----------------------------------------------------------------------------
def make_ortho_conv2d_weights(key, in_channels, out_channels, kernel_size, groups=1):
    kh, kw = kernel_size
    icg = in_channels // groups
    ocg = out_channels // groups
    icg_ = icg  # * stride[0] * stride[1] with stride = (1, 1)
    mcg = max(ocg, icg_)  # max_channels_per_group
    ks_per_stride = (kh, kw)

    kernels = []
    for _g in range(groups):
        factors = []
        for axis in range(2):
            key, k_perm = jax.random.split(key)
            # axis matrix, 'permutation' init: identity with permuted columns
            perm = jax.random.permutation(k_perm, mcg)
            A = jnp.eye(mcg, dtype=jnp.float32)[:, perm]

            # position matrices: 'rX' ~ random column-orthonormal (mcg, mcg//2);
            # 'lX' set by reset_parameters() to A^T @ rX
            pos_mats = {}
            for pos in range(2, ks_per_stride[axis] + 1):
                if pos % 2 == 0:
                    key, k_r = jax.random.split(key)
                    q, _ = jnp.linalg.qr(
                        jax.random.normal(k_r, (mcg, mcg // 2), jnp.float32))
                    pos_mats[('r', pos // 2)] = q
                else:
                    pos_mats[('l', pos // 2)] = A.T @ pos_mats[('r', pos // 2)]

            # paraunitary factor for this axis (OrthoConv2d.paraunitary)
            factor = A[None]                      # (1, mcg, mcg)
            zeros = jnp.zeros_like(factor)        # (1, mcg, mcg)
            for pos in range(2, ks_per_stride[axis] + 1):
                fl = jnp.concatenate([zeros, factor], axis=0)
                fr = jnp.concatenate([factor, zeros], axis=0)
                if pos % 2 == 0:
                    m = pos_mats[('r', pos // 2)]
                    factor = fl + jnp.einsum('kts,sr,nr->ktn', fr - fl, m, m)
                else:
                    m = pos_mats[('l', pos // 2)]
                    factor = fr + jnp.einsum('kts,tr,nr->kns', fl - fr, m, m)
            factors.append(factor)                # (ks_per_stride[axis], mcg, mcg)

        kern = jnp.einsum('hrs,wtr->tshw', factors[0], factors[1])  # (mcg,mcg,kh,kw)
        kern = kern[:ocg, :icg_]
        kernels.append(kern)
    return jnp.concatenate(kernels, axis=0)  # (out_channels, icg, kh, kw) OIHW


# ----------------------------------------------------------------------------
# Pallas kernel: per-(batch, H-tile) im2col RHS in VMEM + one deep MXU dot.
# ----------------------------------------------------------------------------
def _make_fused_conv_kernel(KH, KW, Wp, lane_out, Cp):
    def kernel(x_ref, w_ref, o_ref, rhs_ref):
        # x_ref:   (Cp, L_tile)      bf16, this (batch, h-tile)'s halo'd window
        # w_ref:   (co_tile, KKC)    bf16, taps flattened into contraction dim
        # o_ref:   (co_tile, lane)   bf16, lane-dense 128-mult output tile
        # rhs_ref: (KKC, lane)       bf16 VMEM scratch = fused im2col RHS
        #
        # Build the RHS only once per (batch, h-tile): the scratch persists
        # across the inner ("arbitrary") C_out-tile grid axis.
        @pl.when(pl.program_id(2) == 0)
        def _build_rhs():
            for kh in range(KH):
                for kw in range(KW):
                    t = kh * KW + kw
                    off = kh * Wp + kw
                    # Cp is a multiple of 16 -> full packed-sublane stores.
                    rhs_ref[t * Cp:(t + 1) * Cp, :] = x_ref[:, off:off + lane_out]

        # Single deep contraction on the MXU, f32 accumulation, bf16 store.
        o_ref[...] = jnp.dot(
            w_ref[...], rhs_ref[...],
            preferred_element_type=jnp.float32).astype(o_ref.dtype)

    return kernel


# ----------------------------------------------------------------------------
# Tiling heuristics.
# ----------------------------------------------------------------------------
def _choose_co_tile(C_out):
    if C_out <= 256:
        return C_out
    for t in (256, 128):           # 128-multiples: good for v5e's 128x128 MXUs
        if C_out % t == 0:
            return t
    for t in range(256, 7, -1):    # largest divisor <= 256 that is 8-aligned
        if C_out % t == 0 and t % 8 == 0:
            return t
    # TODO(synk): pad C_out when no usable divisor exists (odd channel counts).
    return C_out


def _vmem_bytes(Cp, KH, KW, Wp, h_tile, co_tile):
    lane = _round_up(h_tile * Wp, 128)
    l_tile = (KH - 1) * Wp + (KW - 1) + lane
    kkc = KH * KW * Cp
    return (2 * Cp * l_tile * 2        # x block, double-buffered bf16
            + 2 * co_tile * kkc * 2    # weight block, double-buffered bf16
            + 2 * co_tile * lane * 2   # out block, double-buffered bf16
            + kkc * lane * 2)          # im2col scratch (single)


def _choose_h_tile(H, Wp, KH, KW, Cp, co_tile, budget):
    best = None
    for ht in range(1, H + 1):
        if H % ht:
            continue
        if _vmem_bytes(Cp, KH, KW, Wp, ht, co_tile) <= budget:
            best = ht
    if best is None:
        # TODO(synk): also tile along W if even a single output row overflows.
        best = 1
    return best


# ----------------------------------------------------------------------------
# Forward wrapper.
# ----------------------------------------------------------------------------
def ortho_conv2d_forward(x, weights):
    """Forward of OrthoConv2d (stride=1, dilation=1, groups=1, circular 'auto' pad).

    x:       (N, C_in, H, W)       NCHW, float32
    weights: (C_out, C_in, KH, KW) OIHW, float32
    returns: (N, C_out, H, W)      NCHW, float32
    """
    N, C_in, H, W = x.shape
    C_out, c_in_w, KH, KW = weights.shape
    assert c_in_w == C_in

    Wp = W + KW - 1

    # Sublane-pack alignment: pad C_in up to a multiple of 16 (bf16 packs 16
    # rows per vreg) so every im2col slab store is a full packed-sublane vst.
    Cp = max(16, _round_up(C_in, 16))
    KKC = KH * KW * Cp

    co_tile = _choose_co_tile(C_out)
    n_co = C_out // co_tile

    # Spatial (output-row) tiling with a halo so per-step VMEM stays bounded
    # (v7x: 64 MiB physical); lane extent rounded to 128 for unmasked stores.
    h_tile = _choose_h_tile(H, Wp, KH, KW, Cp, co_tile, budget=40 << 20)
    n_h = H // h_tile
    lane_out = _round_up(h_tile * Wp, 128)
    L_tile = (KH - 1) * Wp + (KW - 1) + lane_out   # flat per-tile input length

    # 'auto' circular padding: front = K//2, rear = (K-1)//2 per spatial dim.
    x_pad = jnp.pad(
        x, ((0, 0), (0, 0), (KH // 2, (KH - 1) // 2), (KW // 2, (KW - 1) // 2)),
        mode="wrap").astype(jnp.bfloat16)
    x_pad = jnp.pad(x_pad, ((0, 0), (0, Cp - C_in), (0, 0), (0, 0)))  # channel pad

    # Halo-duplicated spatial tiles: tile t needs padded rows
    # [t*h_tile, t*h_tile + h_tile + KH - 1); flatten row-major over (rows, Wp)
    # and zero-pad the lane dim to L_tile so every tap slice stays in bounds.
    row_idx = (jnp.arange(n_h)[:, None] * h_tile
               + jnp.arange(h_tile + KH - 1)[None, :])          # (n_h, ht+KH-1)
    x_tiles = x_pad[:, :, row_idx, :]                           # (N,Cp,n_h,ht+KH-1,Wp)
    x_tiles = jnp.transpose(x_tiles, (0, 2, 1, 3, 4))           # (N,n_h,Cp,ht+KH-1,Wp)
    x_tiles = x_tiles.reshape(N, n_h, Cp, (h_tile + KH - 1) * Wp)
    x_tiles = jnp.pad(
        x_tiles,
        ((0, 0), (0, 0), (0, 0), (0, L_tile - (h_tile + KH - 1) * Wp)))

    # LHS: (C_out, KH*KW*Cp), row order (kh, kw, c) matches the RHS assembly;
    # padded channels get zero weight columns (contribute nothing to the dot).
    w_lhs = jnp.transpose(weights, (0, 2, 3, 1))                # (C_out,KH,KW,C_in)
    w_lhs = jnp.pad(w_lhs, ((0, 0), (0, 0), (0, 0), (0, Cp - C_in)))
    w_lhs = w_lhs.reshape(C_out, KKC).astype(jnp.bfloat16)

    # Explicit VMEM budget from the actual block + scratch sizes (with headroom).
    vmem_est = _vmem_bytes(Cp, KH, KW, Wp, h_tile, co_tile)
    vmem_limit = int(min(64 << 20,
                         max(32 << 20, vmem_est + vmem_est // 2 + (4 << 20))))

    kernel = _make_fused_conv_kernel(KH, KW, Wp, lane_out, Cp)
    out = pl.pallas_call(
        kernel,
        out_shape=jax.ShapeDtypeStruct((N, n_h, C_out, lane_out), jnp.bfloat16),
        grid_spec=pltpu.PrefetchScalarGridSpec(
            num_scalar_prefetch=0,
            grid=(N, n_h, n_co),
            in_specs=[
                pl.BlockSpec((None, None, Cp, L_tile),
                             lambda b, h, co: (b, h, 0, 0)),
                # TODO(synk): add pipeline_mode=pl.Buffered(1) to this weight
                #             block when n_co == 1 (constant block index) to
                #             drop one VMEM buffer on v7x.
                pl.BlockSpec((co_tile, KKC), lambda b, h, co: (co, 0)),
            ],
            out_specs=pl.BlockSpec((None, None, co_tile, lane_out),
                                   lambda b, h, co: (b, h, co, 0)),
            scratch_shapes=[pltpu.VMEM((KKC, lane_out), jnp.bfloat16)],
        ),
        compiler_params=pltpu.CompilerParams(
            dimension_semantics=("parallel", "parallel", "arbitrary"),
            vmem_limit_bytes=vmem_limit),
    )(x_tiles, w_lhs)

    # Valid output pixel (i, j) of tile t sits at lane i*Wp + j; drop the
    # garbage lanes / columns, reassemble rows, cast back to the input dtype.
    out = out[:, :, :, :h_tile * Wp].reshape(N, n_h, C_out, h_tile, Wp)
    out = jnp.transpose(out, (0, 2, 1, 3, 4)).reshape(N, C_out, H, Wp)
    return out[:, :, :, :W].astype(x.dtype)


if __name__ == "__main__":
    key = jax.random.PRNGKey(0)
    k_x, k_w = jax.random.split(key)

    # OrthoConv2d(in_channels=4, out_channels=4, kernel_size=3) on (2,4,16,16).
    N, C_in, H, W = 2, 4, 16, 16
    C_out, K = 4, 3

    x = jax.random.normal(k_x, (N, C_in, H, W), dtype=jnp.float32)
    weights = make_ortho_conv2d_weights(k_w, C_in, C_out, (K, K), groups=1)

    fwd = jax.jit(ortho_conv2d_forward)
    out = jax.block_until_ready(fwd(x, weights))
    assert out.shape == (N, C_out, H, W)

    # Reference: circular pad + valid conv (same semantics as F.conv2d here).
    x_pad = jnp.pad(
        x, ((0, 0), (0, 0), (K // 2, (K - 1) // 2), (K // 2, (K - 1) // 2)),
        mode="wrap")
    # (a) bf16-operand reference (kernel also quantizes its bf16 output store).
    ref_bf16 = lax.conv_general_dilated(
        x_pad.astype(jnp.bfloat16), weights.astype(jnp.bfloat16),
        window_strides=(1, 1), padding="VALID",
        dimension_numbers=("NCHW", "OIHW", "NCHW"),
        preferred_element_type=jnp.float32)
    # (b) full-f32 reference: loose check (difference = bf16 quantization).
    ref_f32 = lax.conv_general_dilated(
        x_pad, weights, window_strides=(1, 1), padding="VALID",
        dimension_numbers=("NCHW", "OIHW", "NCHW"))

    assert jnp.allclose(out, ref_bf16, atol=3e-2, rtol=3e-2)
    assert jnp.allclose(out, ref_f32, atol=2e-1, rtol=1e-1)
    print("KERNEL_OK")
</pallas_src>

<mosaic_0001>
module attributes {stable_mosaic.version = 11 : i64} {
  func.func @kernel(%arg0: i32, %arg1: i32, %arg2: i32, %arg3: memref<1x1x16x422xbf16, #tpu.memory_space<vmem>>, %arg4: memref<4x144xbf16, #tpu.memory_space<vmem>>, %arg5: memref<1x1x4x384xbf16, #tpu.memory_space<vmem>>, %arg6: memref<144x384xbf16, #tpu.memory_space<vmem>>) attributes {dimension_semantics = [#tpu.dimension_semantics<parallel>, #tpu.dimension_semantics<parallel>, #tpu.dimension_semantics<arbitrary>], iteration_bounds = array<i64: 2, 1, 1>, scalar_prefetch = 0 : i64, scratch_operands = 1 : i64, tpu.core_type = #tpu.core_type<tc>, window_params = [{transform_indices = @transform_0, window_bounds = array<i64: 1, 1, 16, 422>}, {transform_indices = @transform_1, window_bounds = array<i64: 4, 144>}, {transform_indices = @transform_2, window_bounds = array<i64: 1, 1, 4, 384>}]} {
    %c0_i32 = arith.constant 0 : i32
    %0 = arith.cmpi eq, %arg2, %c0_i32 : i32
    %1 = arith.extui %0 : i1 to i32
    %c0_i32_0 = arith.constant 0 : i32
    %2 = arith.cmpi ne, %1, %c0_i32_0 : i32
    scf.if %2 {
      %c0_8 = arith.constant 0 : index
      %c0_9 = arith.constant 0 : index
      %c0_10 = arith.constant 0 : index
      %c0_11 = arith.constant 0 : index
      %10 = vector.load %arg3[%c0_8, %c0_9, %c0_10, %c0_11] : memref<1x1x16x422xbf16, #tpu.memory_space<vmem>>, vector<1x1x16x384xbf16>
      %11 = vector.shape_cast %10 : vector<1x1x16x384xbf16> to vector<16x384xbf16>
      %c0_12 = arith.constant 0 : index
      %c0_13 = arith.constant 0 : index
      %12 = vector.load %arg6[%c0_12, %c0_13] : memref<144x384xbf16, #tpu.memory_space<vmem>>, vector<16x384xbf16>
      tpu.vector_store %arg6[%c0_12, %c0_13], %11 {strides = array<i32>} : memref<144x384xbf16, #tpu.memory_space<vmem>>, vector<16x384xbf16>,
      %c0_14 = arith.constant 0 : index
      %c0_15 = arith.constant 0 : index
      %c0_16 = arith.constant 0 : index
      %c1 = arith.constant 1 : index
      %13 = vector.load %arg3[%c0_14, %c0_15, %c0_16, %c1] : memref<1x1x16x422xbf16, #tpu.memory_space<vmem>>, vector<1x1x16x384xbf16>
      %14 = vector.shape_cast %13 : vector<1x1x16x384xbf16> to vector<16x384xbf16>
      %c16 = arith.constant 16 : index
      %c0_17 = arith.constant 0 : index
      %15 = vector.load %arg6[%c16, %c0_17] : memref<144x384xbf16, #tpu.memory_space<vmem>>, vector<16x384xbf16>
      tpu.vector_store %arg6[%c16, %c0_17], %14 {strides = array<i32>} : memref<144x384xbf16, #tpu.memory_space<vmem>>, vector<16x384xbf16>,
      %c0_18 = arith.constant 0 : index
      %c0_19 = arith.constant 0 : index
      %c0_20 = arith.constant 0 : index
      %c2 = arith.constant 2 : index
      %16 = vector.load %arg3[%c0_18, %c0_19, %c0_20, %c2] : memref<1x1x16x422xbf16, #tpu.memory_space<vmem>>, vector<1x1x16x384xbf16>
      %17 = vector.shape_cast %16 : vector<1x1x16x384xbf16> to vector<16x384xbf16>
      %c32 = arith.constant 32 : index
      %c0_21 = arith.constant 0 : index
      %18 = vector.load %arg6[%c32, %c0_21] : memref<144x384xbf16, #tpu.memory_space<vmem>>, vector<16x384xbf16>
      tpu.vector_store %arg6[%c32, %c0_21], %17 {strides = array<i32>} : memref<144x384xbf16, #tpu.memory_space<vmem>>, vector<16x384xbf16>,
      %c0_22 = arith.constant 0 : index
      %c0_23 = arith.constant 0 : index
      %c0_24 = arith.constant 0 : index
      %c18 = arith.constant 18 : index
      %19 = vector.load %arg3[%c0_22, %c0_23, %c0_24, %c18] : memref<1x1x16x422xbf16, #tpu.memory_space<vmem>>, vector<1x1x16x384xbf16>
      %20 = vector.shape_cast %19 : vector<1x1x16x384xbf16> to vector<16x384xbf16>
      %c48 = arith.constant 48 : index
      %c0_25 = arith.constant 0 : index
      %21 = vector.load %arg6[%c48, %c0_25] : memref<144x384xbf16, #tpu.memory_space<vmem>>, vector<16x384xbf16>
      tpu.vector_store %arg6[%c48, %c0_25], %20 {strides = array<i32>} : memref<144x384xbf16, #tpu.memory_space<vmem>>, vector<16x384xbf16>,
      %c0_26 = arith.constant 0 : index
      %c0_27 = arith.constant 0 : index
      %c0_28 = arith.constant 0 : index
      %c19 = arith.constant 19 : index
      %22 = vector.load %arg3[%c0_26, %c0_27, %c0_28, %c19] : memref<1x1x16x422xbf16, #tpu.memory_space<vmem>>, vector<1x1x16x384xbf16>
      %23 = vector.shape_cast %22 : vector<1x1x16x384xbf16> to vector<16x384xbf16>
      %c64 = arith.constant 64 : index
      %c0_29 = arith.constant 0 : index
      %24 = vector.load %arg6[%c64, %c0_29] : memref<144x384xbf16, #tpu.memory_space<vmem>>, vector<16x384xbf16>
      tpu.vector_store %arg6[%c64, %c0_29], %23 {strides = array<i32>} : memref<144x384xbf16, #tpu.memory_space<vmem>>, vector<16x384xbf16>,
      %c0_30 = arith.constant 0 : index
      %c0_31 = arith.constant 0 : index
      %c0_32 = arith.constant 0 : index
      %c20 = arith.constant 20 : index
      %25 = vector.load %arg3[%c0_30, %c0_31, %c0_32, %c20] : memref<1x1x16x422xbf16, #tpu.memory_space<vmem>>, vector<1x1x16x384xbf16>
      %26 = vector.shape_cast %25 : vector<1x1x16x384xbf16> to vector<16x384xbf16>
      %c80 = arith.constant 80 : index
      %c0_33 = arith.constant 0 : index
      %27 = vector.load %arg6[%c80, %c0_33] : memref<144x384xbf16, #tpu.memory_space<vmem>>, vector<16x384xbf16>
      tpu.vector_store %arg6[%c80, %c0_33], %26 {strides = array<i32>} : memref<144x384xbf16, #tpu.memory_space<vmem>>, vector<16x384xbf16>,
      %c0_34 = arith.constant 0 : index
      %c0_35 = arith.constant 0 : index
      %c0_36 = arith.constant 0 : index
      %c36 = arith.constant 36 : index
      %28 = vector.load %arg3[%c0_34, %c0_35, %c0_36, %c36] : memref<1x1x16x422xbf16, #tpu.memory_space<vmem>>, vector<1x1x16x384xbf16>
      %29 = vector.shape_cast %28 : vector<1x1x16x384xbf16> to vector<16x384xbf16>
      %c96 = arith.constant 96 : index
      %c0_37 = arith.constant 0 : index
      %30 = vector.load %arg6[%c96, %c0_37] : memref<144x384xbf16, #tpu.memory_space<vmem>>, vector<16x384xbf16>
      tpu.vector_store %arg6[%c96, %c0_37], %29 {strides = array<i32>} : memref<144x384xbf16, #tpu.memory_space<vmem>>, vector<16x384xbf16>,
      %c0_38 = arith.constant 0 : index
      %c0_39 = arith.constant 0 : index
      %c0_40 = arith.constant 0 : index
      %c37 = arith.constant 37 : index
      %31 = vector.load %arg3[%c0_38, %c0_39, %c0_40, %c37] : memref<1x1x16x422xbf16, #tpu.memory_space<vmem>>, vector<1x1x16x384xbf16>
      %32 = vector.shape_cast %31 : vector<1x1x16x384xbf16> to vector<16x384xbf16>
      %c112 = arith.constant 112 : index
      %c0_41 = arith.constant 0 : index
      %33 = vector.load %arg6[%c112, %c0_41] : memref<144x384xbf16, #tpu.memory_space<vmem>>, vector<16x384xbf16>
      tpu.vector_store %arg6[%c112, %c0_41], %32 {strides = array<i32>} : memref<144x384xbf16, #tpu.memory_space<vmem>>, vector<16x384xbf16>,
      %c0_42 = arith.constant 0 : index
      %c0_43 = arith.constant 0 : index
      %c0_44 = arith.constant 0 : index
      %c38 = arith.constant 38 : index
      %34 = vector.load %arg3[%c0_42, %c0_43, %c0_44, %c38] : memref<1x1x16x422xbf16, #tpu.memory_space<vmem>>, vector<1x1x16x384xbf16>
      %35 = vector.shape_cast %34 : vector<1x1x16x384xbf16> to vector<16x384xbf16>
      %c128 = arith.constant 128 : index
      %c0_45 = arith.constant 0 : index
      %36 = vector.load %arg6[%c128, %c0_45] : memref<144x384xbf16, #tpu.memory_space<vmem>>, vector<16x384xbf16>
      tpu.vector_store %arg6[%c128, %c0_45], %35 {strides = array<i32>} : memref<144x384xbf16, #tpu.memory_space<vmem>>, vector<16x384xbf16>,
    } else {
    }
    %c0 = arith.constant 0 : index
    %c0_1 = arith.constant 0 : index
    %3 = vector.load %arg4[%c0, %c0_1] : memref<4x144xbf16, #tpu.memory_space<vmem>>, vector<4x144xbf16>
    %c0_2 = arith.constant 0 : index
    %c0_3 = arith.constant 0 : index
    %4 = vector.load %arg6[%c0_2, %c0_3] : memref<144x384xbf16, #tpu.memory_space<vmem>>, vector<144x384xbf16>
    %cst = arith.constant dense<0.000000e+00> : vector<4x384xf32>
    %5 = tpu.matmul %3, %4, %cst {dimension_numbers = #tpu.dot_dimension_numbers<[1], [0], [0], [1], [0, 0, 1, 1], [], []>} : vector<4x144xbf16>, vector<144x384xbf16>, vector<4x384xf32> -> vector<4x384xf32>
    %6 = arith.truncf %5 : vector<4x384xf32> to vector<4x384xbf16>
    %c0_4 = arith.constant 0 : index
    %c0_5 = arith.constant 0 : index
    %c0_6 = arith.constant 0 : index
    %c0_7 = arith.constant 0 : index
    %7 = vector.load %arg5[%c0_4, %c0_5, %c0_6, %c0_7] : memref<1x1x4x384xbf16, #tpu.memory_space<vmem>>, vector<1x1x4x384xbf16>
    %8 = vector.shape_cast %7 : vector<1x1x4x384xbf16> to vector<4x384xbf16>
    %9 = vector.shape_cast %6 : vector<4x384xbf16> to vector<1x1x4x384xbf16>
    tpu.vector_store %arg5[%c0_4, %c0_5, %c0_6, %c0_7], %9 {strides = array<i32>} : memref<1x1x4x384xbf16, #tpu.memory_space<vmem>>, vector<1x1x4x384xbf16>,
    return
  }
  func.func @transform_0(%arg0: i32, %arg1: i32, %arg2: i32) -> (i32, i32, i32, i32) {
    %c0_i32 = arith.constant 0 : i32
    %c0_i32_0 = arith.constant 0 : i32
    %c0_i32_1 = arith.constant 0 : i32
    return %arg0, %arg1, %c0_i32, %c0_i32_0 : i32, i32, i32, i32
  }
  func.func @transform_1(%arg0: i32, %arg1: i32, %arg2: i32) -> (i32, i32) {
    %c0_i32 = arith.constant 0 : i32
    %c0_i32_0 = arith.constant 0 : i32
    return %arg2, %c0_i32 : i32, i32
  }
  func.func @transform_2(%arg0: i32, %arg1: i32, %arg2: i32) -> (i32, i32, i32, i32) {
    %c0_i32 = arith.constant 0 : i32
    %c0_i32_0 = arith.constant 0 : i32
    return %arg0, %arg1, %arg2, %c0_i32 : i32, i32, i32, i32
  }
}

</mosaic_0001>

<llo_original>
// kernel: ortho_conv2d_forward.1
$region0: #{ortho_conv2d_forward.1}
  #allocation0 [shape = 'u32[]', space=smem, size = 0x4, offset = 0x4, fixed_abs, tag = 'smem constant byte address 0x4 - core index']
  #allocation1 [shape = 'u32[144,128]{1,0:T(1,128)}', space=vmem, size = 0x12000, scoped, tag = 'internal scratch']
  #allocation2 [shape = 'bf16[144,384]{1,0:T(16,128)(2,1)}', space=vmem, size = 0x1b000, scoped, tag = 'scratch operand']
  %s0 = inlined_call_operand.vmem [shape: bf16[2,1,16,422], index: 0, kind: input, shape index: {}]
  %s1 = inlined_call_operand.vmem [shape: bf16[4,144], index: 1, kind: input, shape index: {}]
  %s2 = inlined_call_operand.vmem [shape: bf16[2,1,4,384], index: 2, kind: output, shape index: {}]
  %s3 = sld [smem:[#allocation0]]
  $region45: #{ortho_conv2d_forward.1} parent=0
    _
  %s5 = ssub.s32 1, %s3
  %s6 = scalar_select 0, %s5, %s3
  loop: start=0, step=1, limit=4
  $region2: #{ortho_conv2d_forward.1} parent=0 // loop_pre_header
    _
  $region3: #{ortho_conv2d_forward.1} parent=0 // loop_header
    %s8 = sphi 0, %s12
    %p9 = scmp.ge.s32.totalorder %s8, 4
    %s15 = sphi 0, %s34
    %s16 = sphi 0, %s30
    %s17 = sphi 0, %s26
    %s18 = sphi 0, %s15
    %s19 = sphi 0, %s16
    %s20 = sphi 0, %s17
    %s21 = sphi 0, %s18
    %s22 = sphi 0, %s19
    %s23 = sphi 0, %s20
    %s39 = sphi 0, %s41
    %s42 = sphi 0, %s39
    %s43 = sphi 0, %s42
    %s59 = sphi 0, %s43
    %s65 = sphi 0, %s67
    %s68 = sphi 0, %s65
    %s69 = sphi 0, %s68
    %s85 = sphi 0, %s69
    %s95 = sphi 0, %s97
    %s98 = sphi 0, %s95
    %s99 = sphi 0, %s98
    %s115 = sphi 0, %s99
  $region4: #{ortho_conv2d_forward.1} parent=0 // loop_header_branch
    %11 = sbr.rel (%p9) target = $region8
  $region5: #{ortho_conv2d_forward.1} parent=0 // loop_body
    %s13 = ssub.s32 %s8, 1
    %s14 = ssub.s32 %s8, 2
    %s24 = sadd.s32 1, %s17
    %p25 = scmp.ge.s32.totalorder %s24, 1
    %s26 = scalar_select %p25, 0, %s24
    %s27 = sadd.s32 1, %s16
    %s28 = scalar_select %p25, %s27, %s16
    %p29 = scmp.ge.s32.totalorder %s28, 1
    %s30 = scalar_select %p29, 0, %s28
    %s31 = sadd.s32 1, %s15
    %s32 = scalar_select %p29, %s31, %s15
    %p33 = scmp.ge.s32.totalorder %s32, 2
    %s34 = scalar_select %p33, 0, %s32
    %s35 = ssub.s32 %s15, %s34
    %s36 = ssub.s32 %s16, %s30
    %s37 = sor.u32 %s35, %s36
    %p38 = scmp.eq.s32.totalorder %s37, 0
    %s40 = sadd.s32 %s39, 1
    %s41 = scalar_select %p38, %s39, %s40
    %p44 = pneg %p38
    %p45 = scmp.eq.s32.totalorder %s8, 1
    %p46 = por %p44, %p45
    %p47 = scmp.ne.s32.totalorder %s39, %s42
    %p48 = scmp.eq.s32.totalorder %s8, 0
    %p49 = por %p47, %p48
    %p50 = scmp.ne.s32.totalorder %s39, %s42
    %p51 = scmp.eq.s32.totalorder %s13, 1
    %p52 = por %p50, %p51
    %p53 = scmp.ne.s32.totalorder %s42, %s43
    %p54 = scmp.eq.s32.totalorder %s13, 0
    %p55 = por %p53, %p54
    %p56 = scmp.ne.s32.totalorder %s42, %s43
    %p57 = scmp.eq.s32.totalorder %s14, 1
    %p58 = por %p56, %p57
    %p60 = scmp.ne.s32.totalorder %s43, %s59
    %p61 = scmp.eq.s32.totalorder %s14, 0
    %p62 = por %p60, %p61
    %s63 = ssub.s32 %s17, %s26
    %p64 = scmp.eq.s32.totalorder %s63, 0
    %s66 = sadd.s32 %s65, 1
    %s67 = scalar_select %p64, %s65, %s66
    %p70 = pneg %p64
    %p71 = scmp.eq.s32.totalorder %s8, 1
    %p72 = por %p70, %p71
    %p73 = scmp.ne.s32.totalorder %s65, %s68
    %p74 = scmp.eq.s32.totalorder %s8, 0
    %p75 = por %p73, %p74
    %p76 = scmp.ne.s32.totalorder %s65, %s68
    %p77 = scmp.eq.s32.totalorder %s13, 1
    %p78 = por %p76, %p77
    %p79 = scmp.ne.s32.totalorder %s68, %s69
    %p80 = scmp.eq.s32.totalorder %s13, 0
    %p81 = por %p79, %p80
    %p82 = scmp.ne.s32.totalorder %s68, %s69
    %p83 = scmp.eq.s32.totalorder %s14, 1
    %p84 = por %p82, %p83
    %p86 = scmp.ne.s32.totalorder %s69, %s85
    %p87 = scmp.eq.s32.totalorder %s14, 0
    %p88 = por %p86, %p87
    %s89 = ssub.s32 %s15, %s34
    %s90 = ssub.s32 %s16, %s30
    %s91 = sor.u32 %s89, %s90
    %s92 = ssub.s32 %s17, %s26
    %s93 = sor.u32 %s91, %s92
    %p94 = scmp.eq.s32.totalorder %s93, 0
    %s96 = sadd.s32 %s95, 1
    %s97 = scalar_select %p94, %s95, %s96
    %p100 = pneg %p94
    %p101 = scmp.eq.s32.totalorder %s8, 1
    %p102 = por %p100, %p101
    %p103 = scmp.ne.s32.totalorder %s95, %s98
    %p104 = scmp.eq.s32.totalorder %s8, 0
    %p105 = por %p103, %p104
    %p106 = scmp.ne.s32.totalorder %s95, %s98
    %p107 = scmp.eq.s32.totalorder %s13, 1
    %p108 = por %p106, %p107
    %p109 = scmp.ne.s32.totalorder %s98, %s99
    %p110 = scmp.eq.s32.totalorder %s13, 0
    %p111 = por %p109, %p110
    %p112 = scmp.ne.s32.totalorder %s98, %s99
    %p113 = scmp.eq.s32.totalorder %s14, 1
    %p114 = por %p112, %p113
    %p116 = scmp.ne.s32.totalorder %s99, %s115
    %p117 = scmp.eq.s32.totalorder %s14, 0
    %p118 = por %p116, %p117
    %p119 = scmp.le.s32.totalorder 1, %s8
    %p120 = scmp.lt.s32.totalorder %s8, 3
    %p121 = pnand %p119, %p120
    %p122 = pneg %p121
    // Predicated region
    $region9: #{ortho_conv2d_forward.1} parent=5 // pred_check
      _
    $region10: #{ortho_conv2d_forward.1} parent=5 // pred_check_branch
      %124 = sbr.rel (%p121) target = $region12
    $region11: #{ortho_conv2d_forward.1} parent=5 // pred_region
      %s125 = ssub.s32 %s8, 1
      // Predicated region
      $region13: #{ortho_conv2d_forward.1} parent=11 // pred_check
        %p126 = pneg %p81
      $region14: #{ortho_conv2d_forward.1} parent=11 // pred_check_branch
        %128 = sbr.rel (%p126) target = $region16
      $region15: #{ortho_conv2d_forward.1} parent=11 // pred_region
        %p129 = scmp.lt.s32.totalorder %s20, 0
        %s130 = scalar_select %p129, %s20, 0
        %s131 = smul.addr %s130, 2
        %s132 = smul.addr %s131, 2
        %s133 = scalar_lea.vmem %s1, %s132
      $region16: #{ortho_conv2d_forward.1} parent=11 // pred_fallthru
        _
    $region12: #{ortho_conv2d_forward.1} parent=5 // pred_fallthru
      _
    %p134 = scmp.lt.s32.totalorder %s8, 2
    // Predicated region
    $region17: #{ortho_conv2d_forward.1} parent=5 // pred_check
      %p135 = pneg %p134
    $region18: #{ortho_conv2d_forward.1} parent=5 // pred_check_branch
      %137 = sbr.rel (%p135) target = $region20
    $region19: #{ortho_conv2d_forward.1} parent=5 // pred_region
      // Predicated region
      $region21: #{ortho_conv2d_forward.1} parent=19 // pred_check
        %p138 = pneg %p49
      $region22: #{ortho_conv2d_forward.1} parent=19 // pred_check_branch
        %140 = sbr.rel (%p138) target = $region24
      $region23: #{ortho_conv2d_forward.1} parent=19 // pred_region
        %p141 = scmp.lt.s32.totalorder %s15, 1
        %s142 = scalar_select %p141, %s15, 1
        %p143 = scmp.lt.s32.totalorder %s16, 0
        %s144 = scalar_select %p143, %s16, 0
        %s145 = smul.addr %s144, 8
        %s146 = smul.addr %s142, 8
        %s147 = sadd.s32 %s145, %s146
        %s148 = smul.addr %s147, 4
        %s149 = scalar_lea.vmem %s0, %s148
      $region24: #{ortho_conv2d_forward.1} parent=19 // pred_fallthru
        _
    $region20: #{ortho_conv2d_forward.1} parent=5 // pred_fallthru
      _
    %p150 = scmp.le.s32.totalorder 1, %s8
    %p151 = scmp.lt.s32.totalorder %s8, 3
    %p152 = pnand %p150, %p151
    %p153 = pneg %p152
    // Predicated region
    $region25: #{ortho_conv2d_forward.1} parent=5 // pred_check
      _
    $region26: #{ortho_conv2d_forward.1} parent=5 // pred_check_branch
      %155 = sbr.rel (%p152) target = $region28
    $region27: #{ortho_conv2d_forward.1} parent=5 // pred_region
      %s156 = ssub.s32 %s8, 1
      %p157 = scmp.lt.s32.totalorder %s18, 1
      %s158 = scalar_select %p157, %s18, 1
      %p159 = scmp.lt.s32.totalorder %s19, 0
      %s160 = scalar_select %p159, %s19, 0
      %s161 = smul.addr %s160, 8
      %s162 = smul.addr %s158, 8
      %s163 = sadd.s32 %s161, %s162
      %s164 = smul.addr %s163, 4
      %s165 = scalar_lea.vmem %s0, %s164
      %p166 = pneg %p55
      %p167 = pneg %p52
      %p168 = scmp.lt.s32.totalorder %s20, 0
      %s169 = scalar_select %p168, %s20, 0
      %s170 = smul.addr %s169, 2
      %s171 = smul.addr %s170, 2
      %s172 = scalar_lea.vmem %s1, %s171
      %p173 = pneg %p81
      %p174 = pneg %p78
      %p175 = pneg %p111
      %p176 = pneg %p108
      %p177 = scmp.lt.s32.totalorder %s18, 1
      %s178 = scalar_select %p177, %s18, 1
      %p179 = scmp.lt.s32.totalorder %s19, 0
      %s180 = scalar_select %p179, %s19, 0
      %p181 = scmp.lt.s32.totalorder %s20, 0
      %s182 = scalar_select %p181, %s20, 0
      %s183 = smul.addr %s182, 3
      %s184 = smul.addr %s180, 3
      %s185 = sadd.s32 %s183, %s184
      %s186 = smul.addr %s178, 3
      %s187 = sadd.s32 %s185, %s186
      %s188 = smul.addr %s187, 2
      %s189 = scalar_lea.vmem %s2, %s188
      %p190 = scmp.lt.s32.totalorder %s18, 1
      %s191 = scalar_select %p190, %s18, 1
      %p192 = scmp.lt.s32.totalorder %s19, 0
      %s193 = scalar_select %p192, %s19, 0
      %s194 = smul.addr %s193, 8
      %s195 = smul.addr %s191, 8
      %s196 = sadd.s32 %s194, %s195
      %s197 = smul.addr %s196, 4
      %s198 = scalar_lea.vmem %s0, %s197
      %p199 = scmp.lt.s32.totalorder %s20, 0
      %s200 = scalar_select %p199, %s20, 0
      %s201 = smul.addr %s200, 2
      %s202 = smul.addr %s201, 2
      %s203 = scalar_lea.vmem %s1, %s202
      %p204 = scmp.lt.s32.totalorder %s18, 1
      %s205 = scalar_select %p204, %s18, 1
      %p206 = scmp.lt.s32.totalorder %s19, 0
      %s207 = scalar_select %p206, %s19, 0
      %p208 = scmp.lt.s32.totalorder %s20, 0
      %s209 = scalar_select %p208, %s20, 0
      %s210 = smul.addr %s209, 3
      %s211 = smul.addr %s207, 3
      %s212 = sadd.s32 %s210, %s211
      %s213 = smul.addr %s205, 3
      %s214 = sadd.s32 %s212, %s213
      %s215 = smul.addr %s214, 2
      %s216 = scalar_lea.vmem %s2, %s215
      %p218 = scmp.eq.s32.totalorder %s20, 0
      // Predicated region
      $region29: #{ortho_conv2d_forward.1} parent=27 // pred_check
        %p219 = pneg %p218
      $region30: #{ortho_conv2d_forward.1} parent=27 // pred_check_branch
        %221 = sbr.rel (%p219) target = $region32
      $region31: #{ortho_conv2d_forward.1} parent=27 // pred_region
        %v222 = vld [vmem:[%s198] sm:$0xff]
        %v223 = vld [vmem:[%s198 + $0x8] sm:$0xf]
        %v224 = vld [vmem:[%s198 + $0x10] sm:$0xff]
        %v225 = vld [vmem:[%s198 + $0x18] sm:$0xf]
        %v230 = vunpack.c.l.b16 %v222
        %v231 = vunpack.c.h.b16 %v222
        %v232 = vunpack.c.l.b16 %v223
        %v233 = vunpack.c.l.b16 %v224
        %v234 = vunpack.c.h.b16 %v224
        %v235 = vunpack.c.l.b16 %v225
        %v236 = vpack.c.b16 %v233, %v230
        %v237 = vpack.c.b16 %v234, %v231
        %v238 = vpack.c.b16 %v235, %v232
        %242 = vst [vmem:[#allocation2] sm:$0xff] %v236
        %243 = vst [vmem:[#allocation2 + $0x8] sm:$0xff] %v237
        %244 = vst [vmem:[#allocation2 + $0x10] sm:$0xff] %v238
        %v245 = vld [vmem:[%s198] sm:$0xff]
        %v246 = vld [vmem:[%s198 + $0x8] sm:$0xff]
        %v247 = vld [vmem:[%s198 + $0x10] sm:$0xff]
        %v248 = vld [vmem:[%s198 + $0x18] sm:$0xff]
        %v253 = vunpack.c.l.b16 %v245
        %v254 = vunpack.c.h.b16 %v245
        %v255 = vunpack.c.l.b16 %v246
        %v256 = vunpack.c.h.b16 %v246
        %v257 = vunpack.c.l.b16 %v247
        %v258 = vunpack.c.h.b16 %v247
        %v259 = vunpack.c.l.b16 %v248
        %v260 = vunpack.c.h.b16 %v248
        %v261 = vpack.c.b16 %v257, %v253
        %v262 = vpack.c.b16 %v258, %v254
        %v263 = vpack.c.b16 %v259, %v255
        %v264 = vpack.c.b16 %v260, %v256
        %265 = vrot.lane.b32.xlu0 %v261, 127
        %v266 = vpop.permute.xlu0 %265
        %267 = vrot.lane.b32.xlu0 %v262, 127
        %v268 = vpop.permute.xlu0 %267
        %269 = vrot.lane.b32.xlu0 %v263, 127
        %v270 = vpop.permute.xlu0 %269
        %271 = vrot.lane.b32.xlu0 %v264, 127
        %v272 = vpop.permute.xlu0 %271
        %vm273 = vcmask 1039360
        %v274 = vsel %vm273, %v266, %v268
        %v275 = vsel %vm273, %v268, %v270
        %v276 = vsel %vm273, %v270, %v272
        %280 = vst [vmem:[#allocation2 + $0x18] sm:$0xff] %v274
        %281 = vst [vmem:[#allocation2 + $0x20] sm:$0xff] %v275
        %282 = vst [vmem:[#allocation2 + $0x28] sm:$0xff] %v276
        %v283 = vld [vmem:[%s198] sm:$0xff]
        %v284 = vld [vmem:[%s198 + $0x8] sm:$0xff]
        %v285 = vld [vmem:[%s198 + $0x10] sm:$0xff]
        %v286 = vld [vmem:[%s198 + $0x18] sm:$0xff]
        %v291 = vunpack.c.l.b16 %v283
        %v292 = vunpack.c.h.b16 %v283
        %v293 = vunpack.c.l.b16 %v284
        %v294 = vunpack.c.h.b16 %v284
        %v295 = vunpack.c.l.b16 %v285
        %v296 = vunpack.c.h.b16 %v285
        %v297 = vunpack.c.l.b16 %v286
        %v298 = vunpack.c.h.b16 %v286
        %v299 = vpack.c.b16 %v295, %v291
        %v300 = vpack.c.b16 %v296, %v292
        %v301 = vpack.c.b16 %v297, %v293
        %v302 = vpack.c.b16 %v298, %v294
        %303 = vrot.lane.b32.xlu0 %v299, 126
        %v304 = vpop.permute.xlu0 %303
        %305 = vrot.lane.b32.xlu0 %v300, 126
        %v306 = vpop.permute.xlu0 %305
        %307 = vrot.lane.b32.xlu0 %v301, 126
        %v308 = vpop.permute.xlu0 %307
        %309 = vrot.lane.b32.xlu0 %v302, 126
        %v310 = vpop.permute.xlu0 %309
        %vm311 = vcmask 1031168
        %v312 = vsel %vm311, %v304, %v306
        %v313 = vsel %vm311, %v306, %v308
        %v314 = vsel %vm311, %v308, %v310
        %318 = vst [vmem:[#allocation2 + $0x30] sm:$0xff] %v312
        %319 = vst [vmem:[#allocation2 + $0x38] sm:$0xff] %v313
        %320 = vst [vmem:[#allocation2 + $0x40] sm:$0xff] %v314
        %v321 = vld [vmem:[%s198] sm:$0xff]
        %v322 = vld [vmem:[%s198 + $0x8] sm:$0xff]
        %v323 = vld [vmem:[%s198 + $0x10] sm:$0xff]
        %v324 = vld [vmem:[%s198 + $0x18] sm:$0xff]
        %v329 = vunpack.c.l.b16 %v321
        %v330 = vunpack.c.h.b16 %v321
        %v331 = vunpack.c.l.b16 %v322
        %v332 = vunpack.c.h.b16 %v322
        %v333 = vunpack.c.l.b16 %v323
        %v334 = vunpack.c.h.b16 %v323
        %v335 = vunpack.c.l.b16 %v324
        %v336 = vunpack.c.h.b16 %v324
        %v337 = vpack.c.b16 %v333, %v329
        %v338 = vpack.c.b16 %v334, %v330
        %v339 = vpack.c.b16 %v335, %v331
        %v340 = vpack.c.b16 %v336, %v332
        %341 = vrot.lane.b32.xlu0 %v337, 110
        %v342 = vpop.permute.xlu0 %341
        %343 = vrot.lane.b32.xlu0 %v338, 110
        %v344 = vpop.permute.xlu0 %343
        %345 = vrot.lane.b32.xlu0 %v339, 110
        %v346 = vpop.permute.xlu0 %345
        %347 = vrot.lane.b32.xlu0 %v340, 110
        %v348 = vpop.permute.xlu0 %347
        %vm349 = vcmask 900096
        %v350 = vsel %vm349, %v342, %v344
        %v351 = vsel %vm349, %v344, %v346
        %v352 = vsel %vm349, %v346, %v348
        %356 = vst [vmem:[#allocation2 + $0x48] sm:$0xff] %v350
        %357 = vst [vmem:[#allocation2 + $0x50] sm:$0xff] %v351
        %358 = vst [vmem:[#allocation2 + $0x58] sm:$0xff] %v352
        %v359 = vld [vmem:[%s198] sm:$0xff]
        %v360 = vld [vmem:[%s198 + $0x8] sm:$0xff]
        %v361 = vld [vmem:[%s198 + $0x10] sm:$0xff]
        %v362 = vld [vmem:[%s198 + $0x18] sm:$0xff]
        %v367 = vunpack.c.l.b16 %v359
        %v368 = vunpack.c.h.b16 %v359
        %v369 = vunpack.c.l.b16 %v360
        %v370 = vunpack.c.h.b16 %v360
        %v371 = vunpack.c.l.b16 %v361
        %v372 = vunpack.c.h.b16 %v361
        %v373 = vunpack.c.l.b16 %v362
        %v374 = vunpack.c.h.b16 %v362
        %v375 = vpack.c.b16 %v371, %v367
        %v376 = vpack.c.b16 %v372, %v368
        %v377 = vpack.c.b16 %v373, %v369
        %v378 = vpack.c.b16 %v374, %v370
        %379 = vrot.lane.b32.xlu0 %v375, 109
        %v380 = vpop.permute.xlu0 %379
        %381 = vrot.lane.b32.xlu0 %v376, 109
        %v382 = vpop.permute.xlu0 %381
        %383 = vrot.lane.b32.xlu0 %v377, 109
        %v384 = vpop.permute.xlu0 %383
        %385 = vrot.lane.b32.xlu0 %v378, 109
        %v386 = vpop.permute.xlu0 %385
        %vm387 = vcmask 891904
        %v388 = vsel %vm387, %v380, %v382
        %v389 = vsel %vm387, %v382, %v384
        %v390 = vsel %vm387, %v384, %v386
        %394 = vst [vmem:[#allocation2 + $0x60] sm:$0xff] %v388
        %395 = vst [vmem:[#allocation2 + $0x68] sm:$0xff] %v389
        %396 = vst [vmem:[#allocation2 + $0x70] sm:$0xff] %v390
        %v397 = vld [vmem:[%s198] sm:$0xff]
        %v398 = vld [vmem:[%s198 + $0x8] sm:$0xff]
        %v399 = vld [vmem:[%s198 + $0x10] sm:$0xff]
        %v400 = vld [vmem:[%s198 + $0x18] sm:$0xff]
        %v405 = vunpack.c.l.b16 %v397
        %v406 = vunpack.c.h.b16 %v397
        %v407 = vunpack.c.l.b16 %v398
        %v408 = vunpack.c.h.b16 %v398
        %v409 = vunpack.c.l.b16 %v399
        %v410 = vunpack.c.h.b16 %v399
        %v411 = vunpack.c.l.b16 %v400
        %v412 = vunpack.c.h.b16 %v400
        %v413 = vpack.c.b16 %v409, %v405
        %v414 = vpack.c.b16 %v410, %v406
        %v415 = vpack.c.b16 %v411, %v407
        %v416 = vpack.c.b16 %v412, %v408
        %417 = vrot.lane.b32.xlu0 %v413, 108
        %v418 = vpop.permute.xlu0 %417
        %419 = vrot.lane.b32.xlu0 %v414, 108
        %v420 = vpop.permute.xlu0 %419
        %421 = vrot.lane.b32.xlu0 %v415, 108
        %v422 = vpop.permute.xlu0 %421
        %423 = vrot.lane.b32.xlu0 %v416, 108
        %v424 = vpop.permute.xlu0 %423
        %vm425 = vcmask 883712
        %v426 = vsel %vm425, %v418, %v420
        %v427 = vsel %vm425, %v420, %v422
        %v428 = vsel %vm425, %v422, %v424
        %432 = vst [vmem:[#allocation2 + $0x78] sm:$0xff] %v426
        %433 = vst [vmem:[#allocation2 + $0x80] sm:$0xff] %v427
        %434 = vst [vmem:[#allocation2 + $0x88] sm:$0xff] %v428
        %v435 = vld [vmem:[%s198] sm:$0xff]
        %v436 = vld [vmem:[%s198 + $0x8] sm:$0xff]
        %v437 = vld [vmem:[%s198 + $0x10] sm:$0xff]
        %v438 = vld [vmem:[%s198 + $0x18] sm:$0xff]
        %v443 = vunpack.c.l.b16 %v435
        %v444 = vunpack.c.h.b16 %v435
        %v445 = vunpack.c.l.b16 %v436
        %v446 = vunpack.c.h.b16 %v436
        %v447 = vunpack.c.l.b16 %v437
        %v448 = vunpack.c.h.b16 %v437
        %v449 = vunpack.c.l.b16 %v438
        %v450 = vunpack.c.h.b16 %v438
        %v451 = vpack.c.b16 %v447, %v443
        %v452 = vpack.c.b16 %v448, %v444
        %v453 = vpack.c.b16 %v449, %v445
        %v454 = vpack.c.b16 %v450, %v446
        %455 = vrot.lane.b32.xlu0 %v451, 92
        %v456 = vpop.permute.xlu0 %455
        %457 = vrot.lane.b32.xlu0 %v452, 92
        %v458 = vpop.permute.xlu0 %457
        %459 = vrot.lane.b32.xlu0 %v453, 92
        %v460 = vpop.permute.xlu0 %459
        %461 = vrot.lane.b32.xlu0 %v454, 92
        %v462 = vpop.permute.xlu0 %461
        %vm463 = vcmask 752640
        %v464 = vsel %vm463, %v456, %v458
        %v465 = vsel %vm463, %v458, %v460
        %v466 = vsel %vm463, %v460, %v462
        %470 = vst [vmem:[#allocation2 + $0x90] sm:$0xff] %v464
        %471 = vst [vmem:[#allocation2 + $0x98] sm:$0xff] %v465
        %472 = vst [vmem:[#allocation2 + $0xa0] sm:$0xff] %v466
        %v473 = vld [vmem:[%s198] sm:$0xff]
        %v474 = vld [vmem:[%s198 + $0x8] sm:$0xff]
        %v475 = vld [vmem:[%s198 + $0x10] sm:$0xff]
        %v476 = vld [vmem:[%s198 + $0x18] sm:$0xff]
        %v481 = vunpack.c.l.b16 %v473
        %v482 = vunpack.c.h.b16 %v473
        %v483 = vunpack.c.l.b16 %v474
        %v484 = vunpack.c.h.b16 %v474
        %v485 = vunpack.c.l.b16 %v475
        %v486 = vunpack.c.h.b16 %v475
        %v487 = vunpack.c.l.b16 %v476
        %v488 = vunpack.c.h.b16 %v476
        %v489 = vpack.c.b16 %v485, %v481
        %v490 = vpack.c.b16 %v486, %v482
        %v491 = vpack.c.b16 %v487, %v483
        %v492 = vpack.c.b16 %v488, %v484
        %493 = vrot.lane.b32.xlu0 %v489, 91
        %v494 = vpop.permute.xlu0 %493
        %495 = vrot.lane.b32.xlu0 %v490, 91
        %v496 = vpop.permute.xlu0 %495
        %497 = vrot.lane.b32.xlu0 %v491, 91
        %v498 = vpop.permute.xlu0 %497
        %499 = vrot.lane.b32.xlu0 %v492, 91
        %v500 = vpop.permute.xlu0 %499
        %vm501 = vcmask 744448
        %v502 = vsel %vm501, %v494, %v496
        %v503 = vsel %vm501, %v496, %v498
        %v504 = vsel %vm501, %v498, %v500
        %508 = vst [vmem:[#allocation2 + $0xa8] sm:$0xff] %v502
        %509 = vst [vmem:[#allocation2 + $0xb0] sm:$0xff] %v503
        %510 = vst [vmem:[#allocation2 + $0xb8] sm:$0xff] %v504
        %v511 = vld [vmem:[%s198] sm:$0xff]
        %v512 = vld [vmem:[%s198 + $0x8] sm:$0xff]
        %v513 = vld [vmem:[%s198 + $0x10] sm:$0xff]
        %v514 = vld [vmem:[%s198 + $0x18] sm:$0xff]
        %v519 = vunpack.c.l.b16 %v511
        %v520 = vunpack.c.h.b16 %v511
        %v521 = vunpack.c.l.b16 %v512
        %v522 = vunpack.c.h.b16 %v512
        %v523 = vunpack.c.l.b16 %v513
        %v524 = vunpack.c.h.b16 %v513
        %v525 = vunpack.c.l.b16 %v514
        %v526 = vunpack.c.h.b16 %v514
        %v527 = vpack.c.b16 %v523, %v519
        %v528 = vpack.c.b16 %v524, %v520
        %v529 = vpack.c.b16 %v525, %v521
        %v530 = vpack.c.b16 %v526, %v522
        %531 = vrot.lane.b32.xlu0 %v527, 90
        %v532 = vpop.permute.xlu0 %531
        %533 = vrot.lane.b32.xlu0 %v528, 90
        %v534 = vpop.permute.xlu0 %533
        %535 = vrot.lane.b32.xlu0 %v529, 90
        %v536 = vpop.permute.xlu0 %535
        %537 = vrot.lane.b32.xlu0 %v530, 90
        %v538 = vpop.permute.xlu0 %537
        %vm539 = vcmask 736256
        %v540 = vsel %vm539, %v532, %v534
        %v541 = vsel %vm539, %v534, %v536
        %v542 = vsel %vm539, %v536, %v538
        %546 = vst [vmem:[#allocation2 + $0xc0] sm:$0xff] %v540
        %547 = vst [vmem:[#allocation2 + $0xc8] sm:$0xff] %v541
        %548 = vst [vmem:[#allocation2 + $0xd0] sm:$0xff] %v542
      $region32: #{ortho_conv2d_forward.1} parent=27 // pred_fallthru
        _
      %v549 = vld [vmem:[%s203] sm:$0xf]
      %v550 = vld [vmem:[#allocation2] sm:$0xff]
      %v551 = vld [vmem:[#allocation2 + $0x8] sm:$0xff]
      %v552 = vld [vmem:[#allocation2 + $0x10] sm:$0xff]
      %v553 = vld [vmem:[#allocation2 + $0x18] sm:$0xff]
      %v554 = vld [vmem:[#allocation2 + $0x20] sm:$0xff]
      %v555 = vld [vmem:[#allocation2 + $0x28] sm:$0xff]
      %v556 = vld [vmem:[#allocation2 + $0x30] sm:$0xff]
      %v557 = vld [vmem:[#allocation2 + $0x38] sm:$0xff]
      %v558 = vld [vmem:[#allocation2 + $0x40] sm:$0xff]
      %v559 = vld [vmem:[#allocation2 + $0x48] sm:$0xff]
      %v560 = vld [vmem:[#allocation2 + $0x50] sm:$0xff]
      %v561 = vld [vmem:[#allocation2 + $0x58] sm:$0xff]
      %v562 = vld [vmem:[#allocation2 + $0x60] sm:$0xff]
      %v563 = vld [vmem:[#allocation2 + $0x68] sm:$0xff]
      %v564 = vld [vmem:[#allocation2 + $0x70] sm:$0xff]
      %v565 = vld [vmem:[#allocation2 + $0x78] sm:$0xff]
      %v566 = vld [vmem:[#allocation2 + $0x80] sm:$0xff]
      %v567 = vld [vmem:[#allocation2 + $0x88] sm:$0xff]
      %v568 = vld [vmem:[#allocation2 + $0x90] sm:$0xff]
      %v569 = vld [vmem:[#allocation2 + $0x98] sm:$0xff]
      %v570 = vld [vmem:[#allocation2 + $0xa0] sm:$0xff]
      %v571 = vld [vmem:[#allocation2 + $0xa8] sm:$0xff]
      %v572 = vld [vmem:[#allocation2 + $0xb0] sm:$0xff]
      %v573 = vld [vmem:[#allocation2 + $0xb8] sm:$0xff]
      %v574 = vld [vmem:[#allocation2 + $0xc0] sm:$0xff]
      %v575 = vld [vmem:[#allocation2 + $0xc8] sm:$0xff]
      %v576 = vld [vmem:[#allocation2 + $0xd0] sm:$0xff]
      %v579 = vunpack.c.l.s4 1983009808
      %v580 = vunpack.c.0.s8 %v579
      %v581 = vlaneseq
      %v582 = vshrl.u32 %v581, 7
      %v583 = vsub.s32 %v580, %v582
      %v584 = vrot.slane %v549, %v583
      %v585 = vcombine.high %v584, %v584
      %vm587 = vcmask 130048
      %v589 = vsel %vm587, %v585, 0
      %591 = vmatprep.subr.bf16.mxu0 %v551
      %592 = vmatpush1.bf16.msra.mxu0 %v550
      %593 = vmatprep.subr.bf16.mxu0 %v554
      %594 = vmatpush1.bf16.msra.mxu0 %v553
      %595 = vmatprep.subr.bf16.mxu0 %v557
      %596 = vmatpush1.bf16.msra.mxu0 %v556
      %597 = vmatprep.subr.bf16.mxu0 %v560
      %598 = vmatpush1.bf16.msra.mxu0 %v559
      %599 = vmatprep.subr.bf16.mxu0 %v563
      %600 = vmatpush1.bf16.msra.mxu0 %v562
      %601 = vmatprep.subr.bf16.mxu0 %v566
      %602 = vmatpush1.bf16.msra.mxu0 %v565
      %603 = vmatprep.subr.bf16.mxu0 %v569
      %604 = vmatpush1.bf16.msra.mxu0 %v568
      %605 = vmatprep.subr.bf16.mxu0 %v572
      %606 = vmatpush1.bf16.msra.mxu0 %v571
      %607 = vmatprep.subr.bf16.mxu0 %v575
      %608 = vmatpush1.bf16.msra.mxu0 %v574
      %609 = vmatprep.subr.bf16.mxu0 0
      %610 = vmatpush1.bf16.msra.mxu0 0
      %611 = vmatprep.subr.bf16.mxu0 0
      %612 = vmatpush1.bf16.msra.mxu0 0
      %613 = vmatprep.subr.bf16.mxu0 0
      %614 = vmatpush1.bf16.msra.mxu0 0
      %615 = vmatprep.subr.bf16.mxu0 0
      %616 = vmatpush1.bf16.msra.mxu0 0
      %617 = vmatprep.subr.bf16.mxu0 0
      %618 = vmatpush1.bf16.msra.mxu0 0
      %619 = vmatprep.subr.bf16.mxu0 0
      %620 = vmatpush1.bf16.msra.mxu0 0
      %621 = vmatprep.subr.bf16.mxu0 0
      %622 = vmatpush1.bf16.msra.mxu0 0
      %623 = vmatprep.mubr.bf16.mxu0 %v589
      %624 = vmatmul.mubr.bf16.gmra.mrb[0].mxu0 %v584
      %v625 = vpop.f32.mrb[0].mxu0
      %v626 = vadd.f32 0.0, %v625
      %v627 = vpop.f32.mrb[0].mxu0
      %v628 = vadd.f32 0.0, %v627
      %v629 = vpop.f32.mrb[0].mxu0
      %v630 = vpop.f32.mrb[0].mxu0
      %631 = vdwg.mxu0
      %632 = vmatprep.subr.bf16.mxu0 0
      %633 = vmatpush1.bf16.msra.mxu0 %v552
      %634 = vmatprep.subr.bf16.mxu0 0
      %635 = vmatpush1.bf16.msra.mxu0 %v555
      %636 = vmatprep.subr.bf16.mxu0 0
      %637 = vmatpush1.bf16.msra.mxu0 %v558
      %638 = vmatprep.subr.bf16.mxu0 0
      %639 = vmatpush1.bf16.msra.mxu0 %v561
      %640 = vmatprep.subr.bf16.mxu0 0
      %641 = vmatpush1.bf16.msra.mxu0 %v564
      %642 = vmatprep.subr.bf16.mxu0 0
      %643 = vmatpush1.bf16.msra.mxu0 %v567
      %644 = vmatprep.subr.bf16.mxu0 0
      %645 = vmatpush1.bf16.msra.mxu0 %v570
      %646 = vmatprep.subr.bf16.mxu0 0
      %647 = vmatpush1.bf16.msra.mxu0 %v573
      %648 = vmatprep.subr.bf16.mxu0 0
      %649 = vmatpush1.bf16.msra.mxu0 %v576
      %650 = vmatprep.subr.bf16.mxu0 0
      %651 = vmatpush1.bf16.msra.mxu0 0
      %652 = vmatprep.subr.bf16.mxu0 0
      %653 = vmatpush1.bf16.msra.mxu0 0
      %654 = vmatprep.subr.bf16.mxu0 0
      %655 = vmatpush1.bf16.msra.mxu0 0
      %656 = vmatprep.subr.bf16.mxu0 0
      %657 = vmatpush1.bf16.msra.mxu0 0
      %658 = vmatprep.subr.bf16.mxu0 0
      %659 = vmatpush1.bf16.msra.mxu0 0
      %660 = vmatprep.subr.bf16.mxu0 0
      %661 = vmatpush1.bf16.msra.mxu0 0
      %662 = vmatprep.subr.bf16.mxu0 0
      %663 = vmatpush1.bf16.msra.mxu0 0
      %664 = vmatprep.mubr.bf16.mxu0 %v589
      %665 = vmatmul.mubr.bf16.gmra.mrb[0].mxu0 %v584
      %v666 = vpop.f32.mrb[0].mxu0
      %v667 = vadd.f32 0.0, %v666
      %v668 = vpop.f32.mrb[0].mxu0
      %v669 = vpop.f32.mrb[0].mxu0
      %v670 = vpop.f32.mrb[0].mxu0
      %671 = vdwg.mxu0
      %v672 = vpack.c.bf16 %v626, %v626
      %v673 = vpack.c.bf16 %v628, %v628
      %v674 = vpack.c.bf16 %v667, %v667
      %v678 = vcombine.low %v672, %v673
      %v680 = vunpack.c.l.s4 1983009808
      %v681 = vunpack.c.0.s8 %v680
      %v682 = vlaneseq
      %v683 = vshrl.u32 %v682, 7
      %v684 = vsub.s32 %v681, %v683
      %v685 = vrot.slane %v678, %v684
      %v687 = vunpack.c.l.s4 1983009808
      %v688 = vunpack.c.0.s8 %v687
      %v689 = vlaneseq
      %v690 = vshrl.u32 %v689, 7
      %v691 = vsub.s32 %v688, %v690
      %v692 = vrot.slane %v674, %v691
      %v693 = vcombine.low %v685, %v692
      %695 = vst [vmem:[%s216] sm:$0x3f] %v693
      %p696 = scmp.lt.s32.totalorder %s18, 1
      %s697 = scalar_select %p696, %s18, 1
      %p698 = scmp.lt.s32.totalorder %s19, 0
      %s699 = scalar_select %p698, %s19, 0
      %p700 = scmp.lt.s32.totalorder %s20, 0
      %s701 = scalar_select %p700, %s20, 0
      %s702 = smul.addr %s701, 3
      %s703 = smul.addr %s699, 3
      %s704 = sadd.s32 %s702, %s703
      %s705 = smul.addr %s697, 3
      %s706 = sadd.s32 %s704, %s705
      %s707 = smul.addr %s706, 2
      %s708 = scalar_lea.vmem %s2, %s707
      // Predicated region
      $region33: #{ortho_conv2d_forward.1} parent=27 // pred_check
        %p709 = pneg %p108
      $region34: #{ortho_conv2d_forward.1} parent=27 // pred_check_branch
        %711 = sbr.rel (%p709) target = $region36
      $region35: #{ortho_conv2d_forward.1} parent=27 // pred_region
        _
      $region36: #{ortho_conv2d_forward.1} parent=27 // pred_fallthru
        _
    $region28: #{ortho_conv2d_forward.1} parent=5 // pred_fallthru
      _
    %p712 = scmp.le.s32.totalorder 2, %s8
    // Predicated region
    $region37: #{ortho_conv2d_forward.1} parent=5 // pred_check
      %p713 = pneg %p712
    $region38: #{ortho_conv2d_forward.1} parent=5 // pred_check_branch
      %715 = sbr.rel (%p713) target = $region40
    $region39: #{ortho_conv2d_forward.1} parent=5 // pred_region
      %s716 = ssub.s32 %s8, 2
      // Predicated region
      $region41: #{ortho_conv2d_forward.1} parent=39 // pred_check
        %p717 = pneg %p114
      $region42: #{ortho_conv2d_forward.1} parent=39 // pred_check_branch
        %719 = sbr.rel (%p717) target = $region44
      $region43: #{ortho_conv2d_forward.1} parent=39 // pred_region
        %p720 = scmp.lt.s32.totalorder %s21, 1
        %s721 = scalar_select %p720, %s21, 1
        %p722 = scmp.lt.s32.totalorder %s22, 0
        %s723 = scalar_select %p722, %s22, 0
        %p724 = scmp.lt.s32.totalorder %s23, 0
        %s725 = scalar_select %p724, %s23, 0
        %s726 = smul.addr %s725, 3
        %s727 = smul.addr %s723, 3
        %s728 = sadd.s32 %s726, %s727
        %s729 = smul.addr %s721, 3
        %s730 = sadd.s32 %s728, %s729
        %s731 = smul.addr %s730, 2
        %s732 = scalar_lea.vmem %s2, %s731
      $region44: #{ortho_conv2d_forward.1} parent=39 // pred_fallthru
        _
    $region40: #{ortho_conv2d_forward.1} parent=5 // pred_fallthru
      _
  $region6: #{ortho_conv2d_forward.1} parent=0 // loop_footer
    %s12 = sadd.s32 1, %s8
  $region7: #{ortho_conv2d_forward.1} parent=0 // loop_footer_branch
    %7 = sbr.rel target = $region3
  $region8: #{ortho_conv2d_forward.1} parent=0 // loop_exit
    _

</llo_original>
